<compile_context>
chip_gen: v5e
topology: v5e:2x2
jax: 0.10.0
libtpu: 0.0.40
codegen_flags: <defaults>
</compile_context>

<pallas_src>
import functools

import jax
import jax.numpy as jnp
from jax.experimental import pallas as pl
from jax.experimental.pallas import tpu as pltpu

_LANE = 128
# Below this element count: single full-array block, no padding, no grid.
# Above it: pad once to (rows, 128) and copy with a row-tiled parallel grid
# (keeps VMEM per block bounded; matters on v7x's 64 MiB VMEM).
_SMALL_LIMIT = 128 * 1024
_TILE_ROWS = 512  # (512, 128) f32 tile = 256 KiB per buffer


def _copy_kernel(w_ref, o_ref):
    # The entire forward pass of WeightModule: pass the parameter through.
    o_ref[...] = w_ref[...]


@jax.jit
def _forward_small(w2d):
    """Copy a persistent (1, n) weight view through a single-block kernel."""
    out = pl.pallas_call(
        _copy_kernel,
        out_shape=jax.ShapeDtypeStruct(w2d.shape, jnp.float32),
        in_specs=[pl.BlockSpec(w2d.shape, lambda: (0, 0))],
        out_specs=pl.BlockSpec(w2d.shape, lambda: (0, 0)),
    )(w2d)
    return out.reshape(-1)


@functools.partial(jax.jit, static_argnames=("n",))
def _forward_large(w_pad, n):
    """Row-tiled copy of a persistent (rows, 128) padded weight buffer."""
    rows = w_pad.shape[0]
    out = pl.pallas_call(
        _copy_kernel,
        out_shape=jax.ShapeDtypeStruct((rows, _LANE), jnp.float32),
        grid_spec=pltpu.PrefetchScalarGridSpec(
            num_scalar_prefetch=0,
            grid=(rows // _TILE_ROWS,),
            in_specs=[pl.BlockSpec((_TILE_ROWS, _LANE), lambda i: (i, 0))],
            out_specs=pl.BlockSpec((_TILE_ROWS, _LANE), lambda i: (i, 0)),
        ),
        compiler_params=pltpu.CompilerParams(
            dimension_semantics=("parallel",)),
    )(w_pad)
    return out.reshape(rows * _LANE)[:n]


def make_weight_module(weight=None, num_basis=None, use_pallas=False):
    """Build the forward fn of WeightModule / WeightTensor.

    Mirrors the PyTorch __init__: if `weight` is None, a zero vector of
    length `num_basis` is created.  Returns (forward, weight).
    """
    if weight is None:
        if num_basis is None:
            raise ValueError("num_basis must be given when weight is None")
        weight = jnp.zeros((num_basis,), dtype=jnp.float32)
    weight = jnp.asarray(weight, dtype=jnp.float32).reshape(-1)
    n = int(weight.shape[0])

    if not use_pallas:
        # Recommended production path: zero ops.
        def forward(*x):
            del x  # forward(*x) never reads its inputs, as in WeightTensor
            return weight
        return forward, weight

    if n <= _SMALL_LIMIT:
        # Hoisted once: (1, n) view of the weight (no per-call reshapes).
        w2d = weight.reshape(1, n)

        def forward(*x):
            del x
            return _forward_small(w2d)
    else:
        # Hoisted once: pad to (rows, 128) with rows a multiple of _TILE_ROWS.
        elems_per_tile = _TILE_ROWS * _LANE
        n_pad = ((n + elems_per_tile - 1) // elems_per_tile) * elems_per_tile
        rows = n_pad // _LANE
        w_pad = (jnp.zeros((n_pad,), jnp.float32)
                 .at[:n].set(weight)
                 .reshape(rows, _LANE))

        def forward(*x):
            del x
            return _forward_large(w_pad, n)

    return forward, weight


if __name__ == "__main__":
    key = jax.random.PRNGKey(0)
    k_w, k_x = jax.random.split(key)

    num_basis = 32
    weight = jax.random.normal(k_w, (num_basis,), dtype=jnp.float32)
    # Example input (e.g. DMP phase values) — ignored by forward, as in PyTorch.
    x = jax.random.normal(k_x, (2, 8), dtype=jnp.float32)

    # Pallas-backed path (exercised here).
    forward, w_param = make_weight_module(weight=weight, use_pallas=True)
    out = forward(x)
    jax.block_until_ready(out)
    assert out.shape == (num_basis,)
    assert out.dtype == jnp.float32
    assert bool(jnp.allclose(out, w_param)), "kernel output != weight vector"

    # Default-construction path (weight=None -> zeros(num_basis)).
    forward0, w0 = make_weight_module(num_basis=num_basis, use_pallas=True)
    out0 = forward0(x)
    jax.block_until_ready(out0)
    assert bool(jnp.allclose(out0, jnp.zeros((num_basis,), jnp.float32)))

    # Recommended (default) production path — no kernel — agrees exactly.
    forward_fast, _ = make_weight_module(weight=weight)
    out_fast = forward_fast(x)
    jax.block_until_ready(out_fast)
    assert bool(jnp.allclose(out, out_fast))

    print("KERNEL_OK")
</pallas_src>

<mosaic_0001>
module attributes {stable_mosaic.version = 11 : i64} {
  func.func @_copy_kernel(%arg0: memref<1x32xf32, #tpu.memory_space<vmem>>, %arg1: memref<1x32xf32, #tpu.memory_space<vmem>>) attributes {dimension_semantics = [], scalar_prefetch = 0 : i64, scratch_operands = 0 : i64, tpu.core_type = #tpu.core_type<tc>} {
    %c0 = arith.constant 0 : index
    %c0_0 = arith.constant 0 : index
    %0 = vector.load %arg0[%c0, %c0_0] : memref<1x32xf32, #tpu.memory_space<vmem>>, vector<1x32xf32>
    %c0_1 = arith.constant 0 : index
    %c0_2 = arith.constant 0 : index
    %1 = vector.load %arg1[%c0_1, %c0_2] : memref<1x32xf32, #tpu.memory_space<vmem>>, vector<1x32xf32>
    tpu.vector_store %arg1[%c0_1, %c0_2], %0 {strides = array<i32>} : memref<1x32xf32, #tpu.memory_space<vmem>>, vector<1x32xf32>,
    return
  }
}

</mosaic_0001>

<llo_original>
// kernel: _forward_small.1
$region0: #{_forward_small.1}
  #allocation0 [shape = 'u32[]', space=smem, size = 0x4, offset = 0x4, fixed_abs, tag = 'smem constant byte address 0x4 - core index']
  #allocation1 [shape = 'u32[72,128]{1,0:T(1,128)}', space=vmem, size = 0x9000, scoped, tag = 'internal scratch']
  %s0 = inlined_call_operand.hbm [shape: f32[1,32], index: 0, kind: input, shape index: {}]
  %s1 = inlined_call_operand.hbm [shape: f32[1,32], index: 1, kind: output, shape index: {}]
  %s2 = sld [smem:[#allocation0]]
  $region18: #{_forward_small.1} parent=0
    _
  %s4 = ssub.s32 1, %s2
  %s5 = scalar_select 0, %s4, %s2
  $region1: #{_forward_small.1} parent=0
    #allocation2 [shape = 'u8[512]{0}', space=vmem, size = 0x400, scoped, tag = 'input window, operand 0, single buffered']
    #allocation3 [shape = 's32[1]{0}', space=sflag, size = 0x4, scoped, tag = 'scoped memory for _forward_small.1']
    #allocation4 [shape = 's32[1]{0}', space=sflag, size = 0x4, scoped, tag = 'scoped memory for _forward_small.1']
    #allocation5 [shape = 'u8[512]{0}', space=vmem, size = 0x400, scoped, tag = 'output window, operand 0, single buffered']
    %6 = vsyncpa [#allocation3], 0
    %7 = vsyncpa [#allocation4], 0
    // Predicated region
    $region2: #{_forward_small.1} parent=1 // pred_check
      _
    $region3: #{_forward_small.1} parent=1 // pred_check_branch
      %9 = sbr.rel (0) target = $region5
    $region4: #{_forward_small.1} parent=1 // pred_region
      %11 = vsyncadd [#allocation3], 0
      %s13 = sshll.u32 %s0, 4
      %s14 = int_to_ptr.hbm [resolvable:$true] %s13
      %s15 = sshll.u32 [#allocation2], 4
      %s16 = int_to_ptr.vmem [resolvable:$true] %s15
      %18 = dma.hbm_to_vmem [thread:$0]  %s14, 16, %s16, [#allocation3]
    $region5: #{_forward_small.1} parent=1 // pred_fallthru
      _
    // Predicated region
    $region6: #{_forward_small.1} parent=1 // pred_check
      _
    $region7: #{_forward_small.1} parent=1 // pred_check_branch
      %20 = sbr.rel (0) target = $region9
    $region8: #{_forward_small.1} parent=1 // pred_region
      %22 = dma.done [#allocation3], 16
    $region9: #{_forward_small.1} parent=1 // pred_fallthru
      _
    %v23 = vld [vmem:[#allocation2] sm:$0x1]
    %vm24 = vcmask 253952
    %25 = vst.msk [vmem:[#allocation5] sm:$0x1] %vm24, %v23
    // Predicated region
    $region10: #{_forward_small.1} parent=1 // pred_check
      _
    $region11: #{_forward_small.1} parent=1 // pred_check_branch
      %27 = sbr.rel (0) target = $region13
    $region12: #{_forward_small.1} parent=1 // pred_region
      %29 = vsyncadd [#allocation4], 0
      %s31 = sshll.u32 [#allocation5], 4
      %s32 = int_to_ptr.vmem [resolvable:$true] %s31
      %s33 = sshll.u32 %s1, 4
      %s34 = int_to_ptr.hbm [resolvable:$true] %s33
      %36 = dma.vmem_to_hbm [thread:$0]  %s32, 16, %s34, [#allocation4]
    $region13: #{_forward_small.1} parent=1 // pred_fallthru
      _
    // Predicated region
    $region14: #{_forward_small.1} parent=1 // pred_check
      _
    $region15: #{_forward_small.1} parent=1 // pred_check_branch
      %38 = sbr.rel (0) target = $region17
    $region16: #{_forward_small.1} parent=1 // pred_region
      %40 = dma.done [#allocation4], 16
    $region17: #{_forward_small.1} parent=1 // pred_fallthru
      _
    %41 = vsyncpa [#allocation3], 1
    %42 = vsyncpa [#allocation4], 1

</llo_original>
